<compile_context>
chip_gen: v5e
topology: v5e:2x2
jax: 0.10.0
libtpu: 0.0.40
codegen_flags: <defaults>
</compile_context>

<pallas_src>
from math import floor, ceil

import numpy as np
import jax
import jax.numpy as jnp
from jax import lax
from jax.experimental import pallas as pl
from jax.experimental.pallas import tpu as pltpu


# ----------------------------- static window math -----------------------------

def _level_windows(H, W, level):
    """Static window descriptors for one pyramid level (PyTorch pooling math)."""
    kh, kw = ceil(H / level), ceil(W / level)
    ph = floor((kh * level - H + 1) / 2)
    pw = floor((kw * level - W + 1) / 2)
    out_h = (H + 2 * ph - kh) // kh + 1
    out_w = (W + 2 * pw - kw) // kw + 1
    wins = []
    for oh in range(out_h):
        hs, he = oh * kh - ph, oh * kh - ph + kh
        for ow in range(out_w):
            ws, we = ow * kw - pw, ow * kw - pw + kw
            hs_c, he_c = max(hs, 0), min(he, H)
            ws_c, we_c = max(ws, 0), min(we, W)
            assert he_c > hs_c and we_c > ws_c, "empty pooling window"
            # padding contributes zeros (avg) / is simply excluded (max)
            wins.append((hs_c, he_c, ws_c, we_c, kh * kw))
    return wins, out_h * out_w


def _build_pool_matrix(H, W, windows, F_pad, HW_pad):
    """0/1 window-membership matrix (F_pad, HW_pad) + f32 1/(kh*kw) row scale."""
    P = np.zeros((F_pad, HW_pad), dtype=np.float32)
    s = np.ones((F_pad, 1), dtype=np.float32)
    for f, (hs, he, ws, we, denom) in enumerate(windows):
        for h in range(hs, he):
            P[f, h * W + ws:h * W + we] = 1.0
        s[f, 0] = 1.0 / denom                     # count_include_pad=True semantics
    return P, s


# ------------------------------- tiling helpers --------------------------------

def _vmem_capacity_bytes():
    try:
        return int(pltpu.get_tpu_info().vmem_capacity_bytes)
    except Exception:
        return 64 * 1024 * 1024                   # conservative (v7x per-TC VMEM)


def _round_down(v, m):
    return (v // m) * m


def _choose_tile_nc(NC, bytes_per_nc_row, budget, cap=None):
    """Lane-dim tile over N*C: a multiple of 128 (or all of NC when NC <= 128)."""
    if NC <= 128:
        return NC                                  # single full block (full last dim)
    t = budget // max(1, 2 * bytes_per_nc_row)     # double-buffered input blocks
    t = max(128, _round_down(t, 128))
    if NC >= 256:                                  # keep >=2 'parallel' steps (megacore)
        half = max(128, _round_down((NC + 1) // 2 + 127, 128))
        t = min(t, half)
    t = min(t, _round_down(NC + 127, 128))
    if cap is not None:
        t = min(t, cap)
    if t >= 512:                                   # fill the 256-wide MXU (v6e/v7x)
        t = _round_down(t, 256)
    return t


def _vmem_limit_bytes(block_bytes, capacity):
    limit = max(32 << 20, int(1.5 * block_bytes) + (8 << 20))
    return int(min(limit, int(0.75 * capacity)))


# --------------------------------- kernels ------------------------------------

def _make_avg_kernel(precision):
    def kernel(p_ref, s_ref, x_ref, o_ref, acc_ref):
        @pl.when(pl.program_id(1) == 0)
        def _init():
            acc_ref[...] = jnp.zeros_like(acc_ref)

        # (F_pad, TILE_K) . (TILE_NC, TILE_K) contracted over the last dim of both
        # operands -> (F_pad, TILE_NC): the NCHW -> lane-dense transpose is folded
        # into the MXU instead of costing an extra HBM pass.
        acc_ref[...] += lax.dot_general(
            p_ref[...], x_ref[...],
            dimension_numbers=(((1,), (1,)), ((), ())),
            preferred_element_type=jnp.float32,
            precision=precision)

        @pl.when(pl.program_id(1) == pl.num_programs(1) - 1)
        def _finalize():
            o_ref[...] = (acc_ref[...] * s_ref[...]).astype(o_ref.dtype)
    return kernel


def _make_max_kernel(W, windows, F_pad):
    def kernel(x_ref, o_ref):
        # x_ref: (TILE_NC, H*W) native layout.  One in-VMEM (XLU) transpose puts
        # N*C on lanes; each window is then a VALU max across vregs (H bands,
        # shared per output row) plus a short cross-sublane reduce over <= kw rows.
        xt = jnp.transpose(x_ref[...], (1, 0))      # (H*W, TILE_NC)
        tile_nc = xt.shape[1]

        rows, grp = [], 0
        band_key, band = None, None
        for f in range(F_pad):
            if f < len(windows):
                hs, he, ws, we, _denom = windows[f]
                if (hs, he) != band_key:             # share H-band partial max
                    band = xt[hs * W:(hs + 1) * W, :]
                    for h in range(hs + 1, he):      # pure VALU across vregs
                        band = jnp.maximum(band, xt[h * W:(h + 1) * W, :])
                    band_key = (hs, he)
                rows.append(jnp.max(band[ws:we, :], axis=0, keepdims=True))
            else:                                    # F_pad filler rows (sliced off)
                rows.append(jnp.zeros((1, tile_nc), dtype=xt.dtype))
            if len(rows) == 8:                       # sublane-aligned unmasked store
                o_ref[grp * 8:(grp + 1) * 8, :] = jnp.concatenate(
                    rows, axis=0).astype(o_ref.dtype)
                rows, grp = [], grp + 1
    return kernel


# --------------------------------- wrapper ------------------------------------

def spp2d(x, num_level, pool_type='avg_pool'):
    """Pallas implementation of SPP2d.forward for NCHW input x."""
    N, C, H, W = x.shape
    NC, HW = N * C, H * W
    itemsize = jnp.dtype(x.dtype).itemsize

    windows, level_sizes = [], []
    for i in range(num_level):
        wins, nwin = _level_windows(H, W, i + 1)
        windows += wins
        level_sizes.append(nwin)
    F_tot = len(windows)
    F_pad = ((F_tot + 7) // 8) * 8                   # 8-aligned output rows

    cap = _vmem_capacity_bytes()
    xr = x.reshape(NC, HW)                           # free reshape of contiguous NCHW

    if pool_type == 'max_pool':
        tile_nc = _choose_tile_nc(NC, HW * itemsize, max(cap // 6, 2 << 20), cap=1024)
        nc_tiles = pl.cdiv(NC, tile_nc)
        block_bytes = (2 * (tile_nc * HW + F_pad * tile_nc) * itemsize
                       + tile_nc * HW * itemsize)    # + in-kernel transposed copy
        out = pl.pallas_call(
            _make_max_kernel(W, windows, F_pad),
            out_shape=jax.ShapeDtypeStruct((F_pad, NC), x.dtype),
            grid=(nc_tiles,),
            in_specs=[pl.BlockSpec((tile_nc, HW), lambda j: (j, 0))],
            out_specs=pl.BlockSpec((F_pad, tile_nc), lambda j: (0, j)),
            compiler_params=pltpu.CompilerParams(
                dimension_semantics=("parallel",),
                vmem_limit_bytes=_vmem_limit_bytes(block_bytes, cap)),
        )(xr)
    else:  # 'avg_pool'
        budget = max(cap // 4, 4 << 20)
        tile_nc = _choose_tile_nc(NC, HW * itemsize, budget)
        # K-tile the H*W reduction only when a full-row block would strain VMEM.
        if 2 * tile_nc * HW * itemsize <= budget or HW <= 1024:
            tile_k = HW
        else:
            tile_k = max(512, _round_down(budget // max(1, 2 * tile_nc * itemsize), 128))
        hw_pad = pl.cdiv(HW, tile_k) * tile_k
        nc_tiles, k_tiles = pl.cdiv(NC, tile_nc), hw_pad // tile_k

        if hw_pad != HW:
            # TODO(synk): rare huge-feature-map path only; zero-pad keeps sums exact.
            xr = jnp.pad(xr, ((0, 0), (0, hw_pad - HW)))

        P_np, s_np = _build_pool_matrix(H, W, windows, F_pad, hw_pad)
        P = jnp.asarray(P_np, dtype=x.dtype)         # 0/1: exact in bf16, MXU-native
        s = jnp.asarray(s_np)                        # f32 1/(kh*kw) row scale

        precision = (lax.Precision.HIGHEST
                     if jnp.dtype(x.dtype) == jnp.dtype(jnp.float32)
                     else lax.Precision.DEFAULT)

        block_bytes = (2 * (F_pad * tile_k * itemsize + tile_nc * tile_k * itemsize
                            + F_pad * tile_nc * itemsize + F_pad * 128 * 4)
                       + F_pad * tile_nc * 4)        # f32 accumulator scratch
        out = pl.pallas_call(
            _make_avg_kernel(precision),
            out_shape=jax.ShapeDtypeStruct((F_pad, NC), x.dtype),
            grid=(nc_tiles, k_tiles),
            in_specs=[pl.BlockSpec((F_pad, tile_k), lambda j, k: (0, k)),
                      pl.BlockSpec((F_pad, 1), lambda j, k: (0, 0)),
                      pl.BlockSpec((tile_nc, tile_k), lambda j, k: (j, k))],
            out_specs=pl.BlockSpec((F_pad, tile_nc), lambda j, k: (0, j)),
            scratch_shapes=[pltpu.VMEM((F_pad, tile_nc), jnp.float32)],
            compiler_params=pltpu.CompilerParams(
                dimension_semantics=("parallel", "arbitrary"),
                vmem_limit_bytes=_vmem_limit_bytes(block_bytes, cap)),
        )(P, s, xr)

    out = out[:F_tot, :NC]                            # drop F padding / garbage lanes
    # columns are flat (n, c) with n-major -> (N, C, F_tot)
    out_ncf = jnp.transpose(out.reshape(F_tot, N, C), (1, 2, 0))

    # Glue (tiny arrays): reproduce torch's per-level view(N, -1) + cat(dim=1).
    parts, base = [], 0
    for nwin in level_sizes:
        parts.append(out_ncf[:, :, base:base + nwin].reshape(N, C * nwin))
        base += nwin
    return jnp.concatenate(parts, axis=1)


# ------------------------------ numpy reference --------------------------------

def _ref_spp_numpy(x, num_level, pool_type='avg_pool'):
    """Pure-numpy reference replicating F.avg_pool2d / F.max_pool2d semantics."""
    N, C, H, W = x.shape
    res = []
    for i in range(num_level):
        level = i + 1
        kh, kw = ceil(H / level), ceil(W / level)
        ph = floor((kh * level - H + 1) / 2)
        pw = floor((kw * level - W + 1) / 2)
        out_h = (H + 2 * ph - kh) // kh + 1
        out_w = (W + 2 * pw - kw) // kw + 1
        fill = -np.inf if pool_type == 'max_pool' else 0.0
        xp = np.full((N, C, H + 2 * ph, W + 2 * pw), fill, dtype=np.float32)
        xp[:, :, ph:ph + H, pw:pw + W] = x
        pooled = np.zeros((N, C, out_h, out_w), np.float32)
        for oh in range(out_h):
            for ow in range(out_w):
                win = xp[:, :, oh * kh:oh * kh + kh, ow * kw:ow * kw + kw]
                if pool_type == 'max_pool':
                    pooled[:, :, oh, ow] = win.max((2, 3))
                else:
                    pooled[:, :, oh, ow] = win.sum((2, 3)) / (kh * kw)
        res.append(pooled.reshape(N, -1))
    return np.concatenate(res, axis=1)


# ----------------------------------- demo --------------------------------------

if __name__ == "__main__":
    key = jax.random.PRNGKey(0)
    N, C, H, W = 2, 4, 16, 16
    num_level = 3

    x = jax.random.normal(key, (N, C, H, W), dtype=jnp.float32)
    expected_feat = C * sum((l + 1) ** 2 for l in range(num_level))

    # avg_pool (MXU pooling-matrix path, K-tiled reduction)
    y_avg = jax.block_until_ready(spp2d(x, num_level, pool_type='avg_pool'))
    ref_avg = _ref_spp_numpy(np.asarray(x), num_level, pool_type='avg_pool')
    assert y_avg.shape == (N, expected_feat), y_avg.shape
    np.testing.assert_allclose(np.asarray(y_avg), ref_avg, rtol=1e-5, atol=1e-5)

    # max_pool (shared H-band VALU max path, 8-row grouped stores)
    y_max = jax.block_until_ready(spp2d(x, num_level, pool_type='max_pool'))
    ref_max = _ref_spp_numpy(np.asarray(x), num_level, pool_type='max_pool')
    assert y_max.shape == (N, expected_feat), y_max.shape
    np.testing.assert_allclose(np.asarray(y_max), ref_max, rtol=1e-5, atol=1e-5)

    print("KERNEL_OK")
</pallas_src>

<mosaic_0001>
module attributes {stable_mosaic.version = 11 : i64} {
  func.func @kernel(%arg0: i32, %arg1: i32, %arg2: memref<16x256xf32, #tpu.memory_space<vmem>>, %arg3: memref<16x1xf32, #tpu.memory_space<vmem>>, %arg4: memref<8x256xf32, #tpu.memory_space<vmem>>, %arg5: memref<16x8xf32, #tpu.memory_space<vmem>>, %arg6: memref<16x8xf32, #tpu.memory_space<vmem>>) attributes {dimension_semantics = [#tpu.dimension_semantics<parallel>, #tpu.dimension_semantics<arbitrary>], iteration_bounds = array<i64: 1, 1>, scalar_prefetch = 0 : i64, scratch_operands = 1 : i64, tpu.core_type = #tpu.core_type<tc>, window_params = [{transform_indices = @transform_0, window_bounds = array<i64: 16, 256>}, {pipeline_mode = #tpu.pipeline_mode<synchronous>, transform_indices = @transform_1, window_bounds = array<i64: 16, 1>}, {transform_indices = @transform_2, window_bounds = array<i64: 8, 256>}, {transform_indices = @transform_3, window_bounds = array<i64: 16, 8>}]} {
    %c0_i32 = arith.constant 0 : i32
    %0 = arith.cmpi eq, %arg1, %c0_i32 : i32
    %1 = arith.extui %0 : i1 to i32
    %c0_i32_0 = arith.constant 0 : i32
    %2 = arith.cmpi ne, %1, %c0_i32_0 : i32
    scf.if %2 {
      %cst_10 = arith.constant 0.000000e+00 : f32
      %12 = vector.broadcast %cst_10 : f32 to vector<16x8xf32>
      %c0_11 = arith.constant 0 : index
      %c0_12 = arith.constant 0 : index
      %13 = vector.load %arg6[%c0_11, %c0_12] : memref<16x8xf32, #tpu.memory_space<vmem>>, vector<16x8xf32>
      tpu.vector_store %arg6[%c0_11, %c0_12], %12 {strides = array<i32>} : memref<16x8xf32, #tpu.memory_space<vmem>>, vector<16x8xf32>,
    } else {
    }
    %c0 = arith.constant 0 : index
    %c0_1 = arith.constant 0 : index
    %3 = vector.load %arg6[%c0, %c0_1] : memref<16x8xf32, #tpu.memory_space<vmem>>, vector<16x8xf32>
    %c0_2 = arith.constant 0 : index
    %c0_3 = arith.constant 0 : index
    %4 = vector.load %arg2[%c0_2, %c0_3] : memref<16x256xf32, #tpu.memory_space<vmem>>, vector<16x256xf32>
    %c0_4 = arith.constant 0 : index
    %c0_5 = arith.constant 0 : index
    %5 = vector.load %arg4[%c0_4, %c0_5] : memref<8x256xf32, #tpu.memory_space<vmem>>, vector<8x256xf32>
    %cst = arith.constant dense<0.000000e+00> : vector<16x8xf32>
    %6 = tpu.matmul %4, %5, %cst {dimension_numbers = #tpu.dot_dimension_numbers<[1], [1], [0], [0], [0, 0, 1, 0], [], []>, precision = #tpu.contract_precision<fp32>} : vector<16x256xf32>, vector<8x256xf32>, vector<16x8xf32> -> vector<16x8xf32>
    %7 = arith.addf %3, %6 : vector<16x8xf32>
    %c0_6 = arith.constant 0 : index
    %c0_7 = arith.constant 0 : index
    %8 = vector.load %arg6[%c0_6, %c0_7] : memref<16x8xf32, #tpu.memory_space<vmem>>, vector<16x8xf32>
    tpu.vector_store %arg6[%c0_6, %c0_7], %7 {strides = array<i32>} : memref<16x8xf32, #tpu.memory_space<vmem>>, vector<16x8xf32>,
    %c0_i32_8 = arith.constant 0 : i32
    %9 = arith.cmpi eq, %arg1, %c0_i32_8 : i32
    %10 = arith.extui %9 : i1 to i32
    %c0_i32_9 = arith.constant 0 : i32
    %11 = arith.cmpi ne, %10, %c0_i32_9 : i32
    scf.if %11 {
      %c0_10 = arith.constant 0 : index
      %c0_11 = arith.constant 0 : index
      %12 = vector.load %arg6[%c0_10, %c0_11] : memref<16x8xf32, #tpu.memory_space<vmem>>, vector<16x8xf32>
      %c0_12 = arith.constant 0 : index
      %c0_13 = arith.constant 0 : index
      %13 = vector.load %arg3[%c0_12, %c0_13] : memref<16x1xf32, #tpu.memory_space<vmem>>, vector<16x1xf32>
      %14 = vector.broadcast %13 : vector<16x1xf32> to vector<16x8xf32>
      %15 = arith.mulf %12, %14 : vector<16x8xf32>
      %c0_14 = arith.constant 0 : index
      %c0_15 = arith.constant 0 : index
      %16 = vector.load %arg5[%c0_14, %c0_15] : memref<16x8xf32, #tpu.memory_space<vmem>>, vector<16x8xf32>
      tpu.vector_store %arg5[%c0_14, %c0_15], %15 {strides = array<i32>} : memref<16x8xf32, #tpu.memory_space<vmem>>, vector<16x8xf32>,
    } else {
    }
    return
  }
  func.func @transform_0(%arg0: i32, %arg1: i32) -> (i32, i32) {
    %c0_i32 = arith.constant 0 : i32
    %c0_i32_0 = arith.constant 0 : i32
    return %c0_i32, %arg1 : i32, i32
  }
  func.func @transform_1(%arg0: i32, %arg1: i32) -> (i32, i32) {
    %c0_i32 = arith.constant 0 : i32
    %c0_i32_0 = arith.constant 0 : i32
    %c0_i32_1 = arith.constant 0 : i32
    return %c0_i32, %c0_i32_0 : i32, i32
  }
  func.func @transform_2(%arg0: i32, %arg1: i32) -> (i32, i32) {
    %c0_i32 = arith.constant 0 : i32
    return %arg0, %arg1 : i32, i32
  }
  func.func @transform_3(%arg0: i32, %arg1: i32) -> (i32, i32) {
    %c0_i32 = arith.constant 0 : i32
    %c0_i32_0 = arith.constant 0 : i32
    return %c0_i32, %arg0 : i32, i32
  }
}

</mosaic_0001>

<llo_original>
// kernel: tpu_custom_call.1
$region0: #{tpu_custom_call.1}
  #allocation0 [shape = 'u32[]', space=smem, size = 0x4, offset = 0x4, fixed_abs, tag = 'smem constant byte address 0x4 - core index']
  #allocation1 [shape = 'u32[72,128]{1,0:T(1,128)}', space=vmem, size = 0x9000, scoped, tag = 'internal scratch']
  #allocation2 [shape = 'f32[16,8]{1,0:T(8,128)}', space=vmem, size = 0x2000, scoped, tag = 'scratch operand']
  %s0 = inlined_call_operand.hbm [shape: f32[16,256], index: 0, kind: input, shape index: {}]
  %s1 = inlined_call_operand.vmem [shape: f32[16,1], index: 1, kind: input, shape index: {}]
  %s2 = inlined_call_operand.vmem [shape: f32[8,256], index: 2, kind: input, shape index: {}]
  %s3 = inlined_call_operand.vmem [shape: f32[16,8], index: 3, kind: output, shape index: {}]
  %s4 = sld [smem:[#allocation0]]
  $region34: #{tpu_custom_call.1} parent=0
    _
  %s6 = ssub.s32 1, %s4
  %s7 = scalar_select 0, %s6, %s4
  $region1: #{tpu_custom_call.1} parent=0
    #allocation3 [shape = 'u8[16384]{0}', space=vmem, size = 0x4000, scoped, tag = 'input window, operand 0, single buffered']
    #allocation4 [shape = 's32[1]{0}', space=sflag, size = 0x4, scoped, tag = 'scoped memory for tpu_custom_call.1']
    %8 = vsyncpa [#allocation4], 0
    // Predicated region
    $region2: #{tpu_custom_call.1} parent=1 // pred_check
      _
    $region3: #{tpu_custom_call.1} parent=1 // pred_check_branch
      %10 = sbr.rel (0) target = $region5
    $region4: #{tpu_custom_call.1} parent=1 // pred_region
      %12 = vsyncadd [#allocation4], 0
      %s13 = sshll.u32 %s0, 4
      %s14 = int_to_ptr.hbm [resolvable:$true] %s13
      %s15 = sshll.u32 [#allocation3], 4
      %s16 = int_to_ptr.vmem [resolvable:$true] %s15
      %21 = dma.hbm_to_vmem [thread:$0]  %s14, 512, %s16, [#allocation4], 256, 256, 16
    $region5: #{tpu_custom_call.1} parent=1 // pred_fallthru
      _
    // Predicated region
    $region6: #{tpu_custom_call.1} parent=1 // pred_check
      _
    $region7: #{tpu_custom_call.1} parent=1 // pred_check_branch
      %23 = sbr.rel (0) target = $region9
    $region8: #{tpu_custom_call.1} parent=1 // pred_region
      _
    $region9: #{tpu_custom_call.1} parent=1 // pred_fallthru
      _
    // Predicated region
    $region10: #{tpu_custom_call.1} parent=1 // pred_check
      _
    $region11: #{tpu_custom_call.1} parent=1 // pred_check_branch
      %25 = sbr.rel (0) target = $region13
    $region12: #{tpu_custom_call.1} parent=1 // pred_region
      _
    $region13: #{tpu_custom_call.1} parent=1 // pred_fallthru
      _
    // Predicated region
    $region14: #{tpu_custom_call.1} parent=1 // pred_check
      _
    $region15: #{tpu_custom_call.1} parent=1 // pred_check_branch
      %27 = sbr.rel (0) target = $region17
    $region16: #{tpu_custom_call.1} parent=1 // pred_region
      %29 = dma.done [#allocation4], 512
    $region17: #{tpu_custom_call.1} parent=1 // pred_fallthru
      _
    %p30 = scmp.eq.s32.totalorder 0, 0
    // Predicated region
    $region18: #{tpu_custom_call.1} parent=1 // pred_check
      %p31 = pneg %p30
    $region19: #{tpu_custom_call.1} parent=1 // pred_check_branch
      %33 = sbr.rel (%p31) target = $region21
    $region20: #{tpu_custom_call.1} parent=1 // pred_region
      %vm34 = vcmask 64512
      %35 = vst.msk [vmem:[#allocation2] sm:$0xff] %vm34, 0.0
      %36 = vst.msk [vmem:[#allocation2 + $0x8] sm:$0xff] %vm34, 0.0
    $region21: #{tpu_custom_call.1} parent=1 // pred_fallthru
      _
    %v37 = vld [vmem:[#allocation2] sm:$0xff]
    %v38 = vld [vmem:[#allocation2 + $0x8] sm:$0xff]
    %v39 = vld [vmem:[#allocation3] sm:$0xff]
    %v40 = vld [vmem:[#allocation3 + $0x8] sm:$0xff]
    %v41 = vld [vmem:[#allocation3 + $0x10] sm:$0xff]
    %v42 = vld [vmem:[#allocation3 + $0x18] sm:$0xff]
    %v43 = vld [vmem:[%s2] sm:$0xff]
    %v44 = vld [vmem:[%s2 + $0x8] sm:$0xff]
    %45 = vmatpush.xpose.msra.mxu0 0.0
    %46 = vmatpush.xpose.msra.mxu0 0.0
    %47 = vmatpush.xpose.msra.mxu0 0.0
    %48 = vmatpush.xpose.msra.mxu0 0.0
    %49 = vmatpush.xpose.msra.mxu0 0.0
    %50 = vmatpush.xpose.msra.mxu0 0.0
    %51 = vmatpush.xpose.msra.mxu0 0.0
    %52 = vmatpush.xpose.msra.mxu0 0.0
    %53 = vmatpush.xpose.msra.mxu0 0.0
    %54 = vmatpush.xpose.msra.mxu0 0.0
    %55 = vmatpush.xpose.msra.mxu0 0.0
    %56 = vmatpush.xpose.msra.mxu0 0.0
    %57 = vmatpush.xpose.msra.mxu0 0.0
    %58 = vmatpush.xpose.msra.mxu0 0.0
    %59 = vmatpush.xpose.msra.mxu0 0.0
    %v60 = vand.u32 %v43, 4294901760
    %61 = vmatpush.xpose.msra.mxu0 %v60
    %v62 = vand.u32 %v39, 4294901760
    %v63 = vsub.f32 %v39, %v62
    %v64 = vand.u32 %v63, 4294901760
    %v65 = vsub.f32 %v63, %v64
    %v66 = vand.u32 %v65, 4294901760
    %67 = vmatmul.f32.gmra.mxu0 %v66
    %v68 = vpop.f32.mrf.mxu0
    %v69 = vadd.f32 0.0, %v68
    %v70 = vand.u32 %v41, 4294901760
    %v71 = vsub.f32 %v41, %v70
    %v72 = vand.u32 %v71, 4294901760
    %v73 = vsub.f32 %v71, %v72
    %v74 = vand.u32 %v73, 4294901760
    %75 = vmatmul.f32.gmra.mxu0 %v74
    %v76 = vpop.f32.mrf.mxu0
    %v77 = vadd.f32 0.0, %v76
    %78 = vdwg.mxu0
    %79 = vmatpush.xpose.msra.mxu0 0.0
    %80 = vmatpush.xpose.msra.mxu0 0.0
    %81 = vmatpush.xpose.msra.mxu0 0.0
    %82 = vmatpush.xpose.msra.mxu0 0.0
    %83 = vmatpush.xpose.msra.mxu0 0.0
    %84 = vmatpush.xpose.msra.mxu0 0.0
    %85 = vmatpush.xpose.msra.mxu0 0.0
    %86 = vmatpush.xpose.msra.mxu0 0.0
    %87 = vmatpush.xpose.msra.mxu0 0.0
    %88 = vmatpush.xpose.msra.mxu0 0.0
    %89 = vmatpush.xpose.msra.mxu0 0.0
    %90 = vmatpush.xpose.msra.mxu0 0.0
    %91 = vmatpush.xpose.msra.mxu0 0.0
    %92 = vmatpush.xpose.msra.mxu0 0.0
    %93 = vmatpush.xpose.msra.mxu0 0.0
    %v94 = vand.u32 %v43, 4294901760
    %v95 = vsub.f32 %v43, %v94
    %v96 = vand.u32 %v95, 4294901760
    %v97 = vsub.f32 %v95, %v96
    %v98 = vand.u32 %v97, 4294901760
    %99 = vmatpush.xpose.msra.mxu0 %v98
    %v100 = vand.u32 %v39, 4294901760
    %101 = vmatmul.f32.gmra.mxu0 %v100
    %v102 = vpop.f32.mrf.mxu0
    %v103 = vadd.f32 %v69, %v102
    %v104 = vand.u32 %v41, 4294901760
    %105 = vmatmul.f32.gmra.mxu0 %v104
    %v106 = vpop.f32.mrf.mxu0
    %v107 = vadd.f32 %v77, %v106
    %108 = vdwg.mxu0
    %109 = vmatpush.xpose.msra.mxu0 0.0
    %110 = vmatpush.xpose.msra.mxu0 0.0
    %111 = vmatpush.xpose.msra.mxu0 0.0
    %112 = vmatpush.xpose.msra.mxu0 0.0
    %113 = vmatpush.xpose.msra.mxu0 0.0
    %114 = vmatpush.xpose.msra.mxu0 0.0
    %115 = vmatpush.xpose.msra.mxu0 0.0
    %116 = vmatpush.xpose.msra.mxu0 0.0
    %117 = vmatpush.xpose.msra.mxu0 0.0
    %118 = vmatpush.xpose.msra.mxu0 0.0
    %119 = vmatpush.xpose.msra.mxu0 0.0
    %120 = vmatpush.xpose.msra.mxu0 0.0
    %121 = vmatpush.xpose.msra.mxu0 0.0
    %122 = vmatpush.xpose.msra.mxu0 0.0
    %123 = vmatpush.xpose.msra.mxu0 0.0
    %v124 = vand.u32 %v43, 4294901760
    %v125 = vsub.f32 %v43, %v124
    %126 = vmatpush.xpose.msra.mxu0 %v125
    %v127 = vand.u32 %v39, 4294901760
    %v128 = vsub.f32 %v39, %v127
    %129 = vmatmul.f32.gmra.mxu0 %v128
    %v130 = vpop.f32.mrf.mxu0
    %v131 = vadd.f32 %v103, %v130
    %v132 = vand.u32 %v41, 4294901760
    %v133 = vsub.f32 %v41, %v132
    %134 = vmatmul.f32.gmra.mxu0 %v133
    %v135 = vpop.f32.mrf.mxu0
    %v136 = vadd.f32 %v107, %v135
    %137 = vdwg.mxu0
    %138 = vmatpush.xpose.msra.mxu0 0.0
    %139 = vmatpush.xpose.msra.mxu0 0.0
    %140 = vmatpush.xpose.msra.mxu0 0.0
    %141 = vmatpush.xpose.msra.mxu0 0.0
    %142 = vmatpush.xpose.msra.mxu0 0.0
    %143 = vmatpush.xpose.msra.mxu0 0.0
    %144 = vmatpush.xpose.msra.mxu0 0.0
    %145 = vmatpush.xpose.msra.mxu0 0.0
    %146 = vmatpush.xpose.msra.mxu0 0.0
    %147 = vmatpush.xpose.msra.mxu0 0.0
    %148 = vmatpush.xpose.msra.mxu0 0.0
    %149 = vmatpush.xpose.msra.mxu0 0.0
    %150 = vmatpush.xpose.msra.mxu0 0.0
    %151 = vmatpush.xpose.msra.mxu0 0.0
    %152 = vmatpush.xpose.msra.mxu0 0.0
    %v153 = vand.u32 %v43, 4294901760
    %154 = vmatpush.xpose.msra.mxu0 %v153
    %v155 = vand.u32 %v39, 4294901760
    %v156 = vsub.f32 %v39, %v155
    %v157 = vand.u32 %v156, 4294901760
    %158 = vmatmul.f32.gmra.mxu0 %v157
    %v159 = vpop.f32.mrf.mxu0
    %v160 = vadd.f32 %v131, %v159
    %v161 = vand.u32 %v41, 4294901760
    %v162 = vsub.f32 %v41, %v161
    %v163 = vand.u32 %v162, 4294901760
    %164 = vmatmul.f32.gmra.mxu0 %v163
    %v165 = vpop.f32.mrf.mxu0
    %v166 = vadd.f32 %v136, %v165
    %167 = vdwg.mxu0
    %168 = vmatpush.xpose.msra.mxu0 0.0
    %169 = vmatpush.xpose.msra.mxu0 0.0
    %170 = vmatpush.xpose.msra.mxu0 0.0
    %171 = vmatpush.xpose.msra.mxu0 0.0
    %172 = vmatpush.xpose.msra.mxu0 0.0
    %173 = vmatpush.xpose.msra.mxu0 0.0
    %174 = vmatpush.xpose.msra.mxu0 0.0
    %175 = vmatpush.xpose.msra.mxu0 0.0
    %176 = vmatpush.xpose.msra.mxu0 0.0
    %177 = vmatpush.xpose.msra.mxu0 0.0
    %178 = vmatpush.xpose.msra.mxu0 0.0
    %179 = vmatpush.xpose.msra.mxu0 0.0
    %180 = vmatpush.xpose.msra.mxu0 0.0
    %181 = vmatpush.xpose.msra.mxu0 0.0
    %182 = vmatpush.xpose.msra.mxu0 0.0
    %v183 = vand.u32 %v43, 4294901760
    %v184 = vsub.f32 %v43, %v183
    %v185 = vand.u32 %v184, 4294901760
    %186 = vmatpush.xpose.msra.mxu0 %v185
    %v187 = vand.u32 %v39, 4294901760
    %188 = vmatmul.f32.gmra.mxu0 %v187
    %v189 = vpop.f32.mrf.mxu0
    %v190 = vadd.f32 %v160, %v189
    %v191 = vand.u32 %v41, 4294901760
    %192 = vmatmul.f32.gmra.mxu0 %v191
    %v193 = vpop.f32.mrf.mxu0
    %v194 = vadd.f32 %v166, %v193
    %195 = vdwg.mxu0
    %196 = vmatpush.xpose.msra.mxu0 0.0
    %197 = vmatpush.xpose.msra.mxu0 0.0
    %198 = vmatpush.xpose.msra.mxu0 0.0
    %199 = vmatpush.xpose.msra.mxu0 0.0
    %200 = vmatpush.xpose.msra.mxu0 0.0
    %201 = vmatpush.xpose.msra.mxu0 0.0
    %202 = vmatpush.xpose.msra.mxu0 0.0
    %203 = vmatpush.xpose.msra.mxu0 0.0
    %204 = vmatpush.xpose.msra.mxu0 0.0
    %205 = vmatpush.xpose.msra.mxu0 0.0
    %206 = vmatpush.xpose.msra.mxu0 0.0
    %207 = vmatpush.xpose.msra.mxu0 0.0
    %208 = vmatpush.xpose.msra.mxu0 0.0
    %209 = vmatpush.xpose.msra.mxu0 0.0
    %210 = vmatpush.xpose.msra.mxu0 0.0
    %v211 = vand.u32 %v43, 4294901760
    %212 = vmatpush.xpose.msra.mxu0 %v211
    %v213 = vand.u32 %v39, 4294901760
    %214 = vmatmul.f32.gmra.mxu0 %v213
    %v215 = vpop.f32.mrf.mxu0
    %v216 = vadd.f32 %v190, %v215
    %v217 = vand.u32 %v41, 4294901760
    %218 = vmatmul.f32.gmra.mxu0 %v217
    %v219 = vpop.f32.mrf.mxu0
    %v220 = vadd.f32 %v194, %v219
    %221 = vdwg.mxu0
    %222 = vmatpush.xpose.msra.mxu0 0.0
    %223 = vmatpush.xpose.msra.mxu0 0.0
    %224 = vmatpush.xpose.msra.mxu0 0.0
    %225 = vmatpush.xpose.msra.mxu0 0.0
    %226 = vmatpush.xpose.msra.mxu0 0.0
    %227 = vmatpush.xpose.msra.mxu0 0.0
    %228 = vmatpush.xpose.msra.mxu0 0.0
    %229 = vmatpush.xpose.msra.mxu0 0.0
    %230 = vmatpush.xpose.msra.mxu0 0.0
    %231 = vmatpush.xpose.msra.mxu0 0.0
    %232 = vmatpush.xpose.msra.mxu0 0.0
    %233 = vmatpush.xpose.msra.mxu0 0.0
    %234 = vmatpush.xpose.msra.mxu0 0.0
    %235 = vmatpush.xpose.msra.mxu0 0.0
    %236 = vmatpush.xpose.msra.mxu0 0.0
    %v237 = vand.u32 %v44, 4294901760
    %238 = vmatpush.xpose.msra.mxu0 %v237
    %v239 = vand.u32 %v40, 4294901760
    %v240 = vsub.f32 %v40, %v239
    %v241 = vand.u32 %v240, 4294901760
    %v242 = vsub.f32 %v240, %v241
    %v243 = vand.u32 %v242, 4294901760
    %244 = vmatmul.f32.gmra.mxu0 %v243
    %v245 = vpop.f32.mrf.mxu0
    %v246 = vadd.f32 %v216, %v245
    %v247 = vand.u32 %v42, 4294901760
    %v248 = vsub.f32 %v42, %v247
    %v249 = vand.u32 %v248, 4294901760
    %v250 = vsub.f32 %v248, %v249
    %v251 = vand.u32 %v250, 4294901760
    %252 = vmatmul.f32.gmra.mxu0 %v251
    %v253 = vpop.f32.mrf.mxu0
    %v254 = vadd.f32 %v220, %v253
    %255 = vdwg.mxu0
    %256 = vmatpush.xpose.msra.mxu0 0.0
    %257 = vmatpush.xpose.msra.mxu0 0.0
    %258 = vmatpush.xpose.msra.mxu0 0.0
    %259 = vmatpush.xpose.msra.mxu0 0.0
    %260 = vmatpush.xpose.msra.mxu0 0.0
    %261 = vmatpush.xpose.msra.mxu0 0.0
    %262 = vmatpush.xpose.msra.mxu0 0.0
    %263 = vmatpush.xpose.msra.mxu0 0.0
    %264 = vmatpush.xpose.msra.mxu0 0.0
    %265 = vmatpush.xpose.msra.mxu0 0.0
    %266 = vmatpush.xpose.msra.mxu0 0.0
    %267 = vmatpush.xpose.msra.mxu0 0.0
    %268 = vmatpush.xpose.msra.mxu0 0.0
    %269 = vmatpush.xpose.msra.mxu0 0.0
    %270 = vmatpush.xpose.msra.mxu0 0.0
    %v271 = vand.u32 %v44, 4294901760
    %v272 = vsub.f32 %v44, %v271
    %v273 = vand.u32 %v272, 4294901760
    %v274 = vsub.f32 %v272, %v273
    %v275 = vand.u32 %v274, 4294901760
    %276 = vmatpush.xpose.msra.mxu0 %v275
    %v277 = vand.u32 %v40, 4294901760
    %278 = vmatmul.f32.gmra.mxu0 %v277
    %v279 = vpop.f32.mrf.mxu0
    %v280 = vadd.f32 %v246, %v279
    %v281 = vand.u32 %v42, 4294901760
    %282 = vmatmul.f32.gmra.mxu0 %v281
    %v283 = vpop.f32.mrf.mxu0
    %v284 = vadd.f32 %v254, %v283
    %285 = vdwg.mxu0
    %286 = vmatpush.xpose.msra.mxu0 0.0
    %287 = vmatpush.xpose.msra.mxu0 0.0
    %288 = vmatpush.xpose.msra.mxu0 0.0
    %289 = vmatpush.xpose.msra.mxu0 0.0
    %290 = vmatpush.xpose.msra.mxu0 0.0
    %291 = vmatpush.xpose.msra.mxu0 0.0
    %292 = vmatpush.xpose.msra.mxu0 0.0
    %293 = vmatpush.xpose.msra.mxu0 0.0
    %294 = vmatpush.xpose.msra.mxu0 0.0
    %295 = vmatpush.xpose.msra.mxu0 0.0
    %296 = vmatpush.xpose.msra.mxu0 0.0
    %297 = vmatpush.xpose.msra.mxu0 0.0
    %298 = vmatpush.xpose.msra.mxu0 0.0
    %299 = vmatpush.xpose.msra.mxu0 0.0
    %300 = vmatpush.xpose.msra.mxu0 0.0
    %v301 = vand.u32 %v44, 4294901760
    %v302 = vsub.f32 %v44, %v301
    %303 = vmatpush.xpose.msra.mxu0 %v302
    %v304 = vand.u32 %v40, 4294901760
    %v305 = vsub.f32 %v40, %v304
    %306 = vmatmul.f32.gmra.mxu0 %v305
    %v307 = vpop.f32.mrf.mxu0
    %v308 = vadd.f32 %v280, %v307
    %v309 = vand.u32 %v42, 4294901760
    %v310 = vsub.f32 %v42, %v309
    %311 = vmatmul.f32.gmra.mxu0 %v310
    %v312 = vpop.f32.mrf.mxu0
    %v313 = vadd.f32 %v284, %v312
    %314 = vdwg.mxu0
    %315 = vmatpush.xpose.msra.mxu0 0.0
    %316 = vmatpush.xpose.msra.mxu0 0.0
    %317 = vmatpush.xpose.msra.mxu0 0.0
    %318 = vmatpush.xpose.msra.mxu0 0.0
    %319 = vmatpush.xpose.msra.mxu0 0.0
    %320 = vmatpush.xpose.msra.mxu0 0.0
    %321 = vmatpush.xpose.msra.mxu0 0.0
    %322 = vmatpush.xpose.msra.mxu0 0.0
    %323 = vmatpush.xpose.msra.mxu0 0.0
    %324 = vmatpush.xpose.msra.mxu0 0.0
    %325 = vmatpush.xpose.msra.mxu0 0.0
    %326 = vmatpush.xpose.msra.mxu0 0.0
    %327 = vmatpush.xpose.msra.mxu0 0.0
    %328 = vmatpush.xpose.msra.mxu0 0.0
    %329 = vmatpush.xpose.msra.mxu0 0.0
    %v330 = vand.u32 %v44, 4294901760
    %331 = vmatpush.xpose.msra.mxu0 %v330
    %v332 = vand.u32 %v40, 4294901760
    %v333 = vsub.f32 %v40, %v332
    %v334 = vand.u32 %v333, 4294901760
    %335 = vmatmul.f32.gmra.mxu0 %v334
    %v336 = vpop.f32.mrf.mxu0
    %v337 = vadd.f32 %v308, %v336
    %v338 = vand.u32 %v42, 4294901760
    %v339 = vsub.f32 %v42, %v338
    %v340 = vand.u32 %v339, 4294901760
    %341 = vmatmul.f32.gmra.mxu0 %v340
    %v342 = vpop.f32.mrf.mxu0
    %v343 = vadd.f32 %v313, %v342
    %344 = vdwg.mxu0
    %345 = vmatpush.xpose.msra.mxu0 0.0
    %346 = vmatpush.xpose.msra.mxu0 0.0
    %347 = vmatpush.xpose.msra.mxu0 0.0
    %348 = vmatpush.xpose.msra.mxu0 0.0
    %349 = vmatpush.xpose.msra.mxu0 0.0
    %350 = vmatpush.xpose.msra.mxu0 0.0
    %351 = vmatpush.xpose.msra.mxu0 0.0
    %352 = vmatpush.xpose.msra.mxu0 0.0
    %353 = vmatpush.xpose.msra.mxu0 0.0
    %354 = vmatpush.xpose.msra.mxu0 0.0
    %355 = vmatpush.xpose.msra.mxu0 0.0
    %356 = vmatpush.xpose.msra.mxu0 0.0
    %357 = vmatpush.xpose.msra.mxu0 0.0
    %358 = vmatpush.xpose.msra.mxu0 0.0
    %359 = vmatpush.xpose.msra.mxu0 0.0
    %v360 = vand.u32 %v44, 4294901760
    %v361 = vsub.f32 %v44, %v360
    %v362 = vand.u32 %v361, 4294901760
    %363 = vmatpush.xpose.msra.mxu0 %v362
    %v364 = vand.u32 %v40, 4294901760
    %365 = vmatmul.f32.gmra.mxu0 %v364
    %v366 = vpop.f32.mrf.mxu0
    %v367 = vadd.f32 %v337, %v366
    %v368 = vand.u32 %v42, 4294901760
    %369 = vmatmul.f32.gmra.mxu0 %v368
    %v370 = vpop.f32.mrf.mxu0
    %v371 = vadd.f32 %v343, %v370
    %372 = vdwg.mxu0
    %373 = vmatpush.xpose.msra.mxu0 0.0
    %374 = vmatpush.xpose.msra.mxu0 0.0
    %375 = vmatpush.xpose.msra.mxu0 0.0
    %376 = vmatpush.xpose.msra.mxu0 0.0
    %377 = vmatpush.xpose.msra.mxu0 0.0
    %378 = vmatpush.xpose.msra.mxu0 0.0
    %379 = vmatpush.xpose.msra.mxu0 0.0
    %380 = vmatpush.xpose.msra.mxu0 0.0
    %381 = vmatpush.xpose.msra.mxu0 0.0
    %382 = vmatpush.xpose.msra.mxu0 0.0
    %383 = vmatpush.xpose.msra.mxu0 0.0
    %384 = vmatpush.xpose.msra.mxu0 0.0
    %385 = vmatpush.xpose.msra.mxu0 0.0
    %386 = vmatpush.xpose.msra.mxu0 0.0
    %387 = vmatpush.xpose.msra.mxu0 0.0
    %v388 = vand.u32 %v44, 4294901760
    %389 = vmatpush.xpose.msra.mxu0 %v388
    %v390 = vand.u32 %v40, 4294901760
    %391 = vmatmul.f32.gmra.mxu0 %v390
    %v392 = vpop.f32.mrf.mxu0
    %v393 = vadd.f32 %v367, %v392
    %v394 = vand.u32 %v42, 4294901760
    %395 = vmatmul.f32.gmra.mxu0 %v394
    %v396 = vpop.f32.mrf.mxu0
    %v397 = vadd.f32 %v371, %v396
    %398 = vdwg.mxu0
    %v399 = vadd.f32 %v37, %v393
    %v400 = vadd.f32 %v38, %v397
    %vm401 = vcmask 64512
    %402 = vst.msk [vmem:[#allocation2] sm:$0xff] %vm401, %v399
    %403 = vst.msk [vmem:[#allocation2 + $0x8] sm:$0xff] %vm401, %v400
    // Predicated region
    $region22: #{tpu_custom_call.1} parent=1 // pred_check
      %p404 = pneg %p30
    $region23: #{tpu_custom_call.1} parent=1 // pred_check_branch
      %406 = sbr.rel (%p404) target = $region25
    $region24: #{tpu_custom_call.1} parent=1 // pred_region
      %v407 = vld [vmem:[#allocation2] sm:$0xff]
      %v408 = vld [vmem:[#allocation2 + $0x8] sm:$0xff]
      %v409 = vld [vmem:[%s1] sm:$0xff]
      %v410 = vld [vmem:[%s1 + $0x8] sm:$0xff]
      %412 = vset.pattern.permute.xlu0 0
      %413 = vperm.xlu0 %412, %v409
      %v414 = vpop.permute.xlu0 %413
      %417 = vset.pattern.permute.xlu0 0
      %418 = vperm.xlu0 %417, %v410
      %v419 = vpop.permute.xlu0 %418
      %v421 = vmul.f32 %v407, %v414
      %v422 = vmul.f32 %v408, %v419
      %423 = vst.msk [vmem:[%s3] sm:$0xff] %vm401, %v421
      %424 = vst.msk [vmem:[%s3 + $0x8] sm:$0xff] %vm401, %v422
    $region25: #{tpu_custom_call.1} parent=1 // pred_fallthru
      _
    // Predicated region
    $region26: #{tpu_custom_call.1} parent=1 // pred_check
      _
    $region27: #{tpu_custom_call.1} parent=1 // pred_check_branch
      %426 = sbr.rel (0) target = $region29
    $region28: #{tpu_custom_call.1} parent=1 // pred_region
      _
    $region29: #{tpu_custom_call.1} parent=1 // pred_fallthru
      _
    // Predicated region
    $region30: #{tpu_custom_call.1} parent=1 // pred_check
      _
    $region31: #{tpu_custom_call.1} parent=1 // pred_check_branch
      %428 = sbr.rel (0) target = $region33
    $region32: #{tpu_custom_call.1} parent=1 // pred_region
      _
    $region33: #{tpu_custom_call.1} parent=1 // pred_fallthru
      _
    %429 = vsyncpa [#allocation4], 1

</llo_original>
